<compile_context>
chip_gen: v5e
topology: v5e:2x2
jax: 0.10.0
libtpu: 0.0.40
codegen_flags: <defaults>
</compile_context>

<pallas_src>
import jax
import jax.numpy as jnp
from jax.experimental import pallas as pl
from jax.experimental.pallas import tpu as pltpu


def _round_up(x, m):
    return (x + m - 1) // m * m


# ---------------------------------------------------------------------------
# Kernel 1: batched input projection  gi = x @ W_ih^T + b_ih   (all timesteps)
# ---------------------------------------------------------------------------
def _input_proj_kernel(x_ref, w_ref, b_ref, gi_ref):
    # x_ref: (rows_tile, Hp) bf16, w_ref: (Hp, 3*Hp) bf16, b_ref: (1, 3*Hp) f32
    gi_ref[...] = (
        jnp.dot(x_ref[...], w_ref[...], preferred_element_type=jnp.float32)
        + b_ref[...]
    )


def _input_projection(x_pad, w_ih_p, b_ih_p):
    """x_pad: (Tp, B, Hp) f32  ->  gi: (Tp, B, 3*Hp) f32."""
    Tp, B, Hp = x_pad.shape
    G = w_ih_p.shape[1]                       # 3 * Hp
    rows = Tp * B
    row_tile = rows if rows <= 256 else 256
    rows_p = _round_up(rows, row_tile)

    x2 = x_pad.reshape(rows, Hp).astype(jnp.bfloat16)
    if rows_p != rows:
        x2 = jnp.pad(x2, ((0, rows_p - rows), (0, 0)))

    gi = pl.pallas_call(
        _input_proj_kernel,
        out_shape=jax.ShapeDtypeStruct((rows_p, G), jnp.float32),
        grid_spec=pltpu.PrefetchScalarGridSpec(
            num_scalar_prefetch=0,
            grid=(rows_p // row_tile,),
            in_specs=[
                pl.BlockSpec((row_tile, Hp), lambda i: (i, 0)),   # x rows
                pl.BlockSpec((Hp, G), lambda i: (0, 0)),          # W_ih^T (bf16)
                pl.BlockSpec((1, G), lambda i: (0, 0)),           # b_ih
            ],
            out_specs=pl.BlockSpec((row_tile, G), lambda i: (i, 0)),
        ),
        compiler_params=pltpu.CompilerParams(
            dimension_semantics=("parallel",),
            vmem_limit_bytes=32 << 20,
        ),
    )(x2, w_ih_p, b_ih_p)

    return gi[:rows].reshape(Tp, B, G)


# ---------------------------------------------------------------------------
# Kernel 2: GRU recurrence over a time chunk (Tc timesteps per grid step)
# ---------------------------------------------------------------------------
def _gru_recurrence_kernel(gi_ref, w_hh_ref, b_hh_ref, h0_ref, out_ref, h_scr):
    """
    gi_ref  : (Tc, B, 3*Hp) f32   precomputed input gates for this chunk
    w_hh_ref: (Hp, 3*Hp)    bf16  hidden->gates weight (lane-aligned, transposed)
    b_hh_ref: (1, 3*Hp)     f32
    h0_ref  : (B, Hp)       f32   initial hidden (lane-padded)
    out_ref : (Tc, B, Hp)   f32   per-timestep hidden (== GRU output)
    h_scr   : (B, Hp)       f32   VMEM scratch carrying hidden across chunks
    """
    c = pl.program_id(0)
    Tc = out_ref.shape[0]
    Hp = out_ref.shape[-1]

    @pl.when(c == 0)
    def _():
        h_scr[...] = h0_ref[...]

    def step(t, h):
        gi = gi_ref[t]                                            # (B, 3*Hp) f32
        # Only the hidden->gates dot remains in the serial recurrence (bf16 MXU,
        # f32 accumulate).  TODO(synk): on v6e this could use matmul_push_rhs to
        # keep W_hh stationary in the MXU across the unrolled timesteps.
        gh = jnp.dot(h.astype(jnp.bfloat16), w_hh_ref[...],
                     preferred_element_type=jnp.float32) + b_hh_ref[...]
        # 128-lane-aligned gate slices -> whole vregs, no cross-lane selects.
        r = jax.nn.sigmoid(gi[:, 0 * Hp:1 * Hp] + gh[:, 0 * Hp:1 * Hp])
        z = jax.nn.sigmoid(gi[:, 1 * Hp:2 * Hp] + gh[:, 1 * Hp:2 * Hp])
        n = jnp.tanh(gi[:, 2 * Hp:3 * Hp] + r * gh[:, 2 * Hp:3 * Hp])
        h_new = (1.0 - z) * n + z * h                             # all f32 VPU math
        out_ref[t] = h_new
        return h_new

    h_final = jax.lax.fori_loop(0, Tc, step, h_scr[...], unroll=True)
    h_scr[...] = h_final


# ---------------------------------------------------------------------------
# Parameter packing: PyTorch (3H, H)/(3H,) -> lane-aligned (Hp, 3*Hp)/(1, 3*Hp)
# ---------------------------------------------------------------------------
def _pack_gate_params(w, b, H, Hp, w_dtype):
    w_p = jnp.zeros((Hp, 3 * Hp), jnp.float32)
    b_p = jnp.zeros((3 * Hp,), jnp.float32)
    for g in range(3):                                # gate order [r | z | n]
        w_p = w_p.at[:H, g * Hp:g * Hp + H].set(w[g * H:(g + 1) * H, :].T)
        b_p = b_p.at[g * Hp:g * Hp + H].set(b[g * H:(g + 1) * H])
    return w_p.astype(w_dtype), b_p.reshape(1, 3 * Hp)


def gru_layer(inputs, hidden, w_ih, w_hh, b_ih, b_hh, *, time_chunk=8):
    """Single nn.GRU(hidden, hidden, batch_first=False) forward.

    inputs : (T, B, H) float32, hidden : (1, B, H) float32
    returns (output (T, B, H), hidden (1, B, H))
    """
    T, B, H = inputs.shape
    Hp = max(128, _round_up(H, 128))          # lane-align each gate block
    Tc = min(time_chunk, T)                   # timesteps per grid step
    Tp = _round_up(T, Tc)

    w_ih_p, b_ih_p = _pack_gate_params(w_ih, b_ih, H, Hp, jnp.bfloat16)
    w_hh_p, b_hh_p = _pack_gate_params(w_hh, b_hh, H, Hp, jnp.bfloat16)

    x_pad = jnp.zeros((Tp, B, Hp), jnp.float32).at[:T, :, :H].set(
        inputs.astype(jnp.float32))
    h0_pad = jnp.zeros((B, Hp), jnp.float32).at[:, :H].set(
        hidden[0].astype(jnp.float32))

    # Hoisted input projection for all timesteps (one batched MXU matmul).
    gi = _input_projection(x_pad, w_ih_p, b_ih_p)          # (Tp, B, 3*Hp) f32

    out_pad = pl.pallas_call(
        _gru_recurrence_kernel,
        out_shape=jax.ShapeDtypeStruct((Tp, B, Hp), jnp.float32),
        grid_spec=pltpu.PrefetchScalarGridSpec(
            num_scalar_prefetch=0,
            grid=(Tp // Tc,),
            in_specs=[
                pl.BlockSpec((Tc, B, 3 * Hp), lambda c: (c, 0, 0)),   # gi chunk
                pl.BlockSpec((Hp, 3 * Hp), lambda c: (0, 0)),         # W_hh^T bf16
                pl.BlockSpec((1, 3 * Hp), lambda c: (0, 0)),          # b_hh
                pl.BlockSpec((B, Hp), lambda c: (0, 0)),              # h0
            ],
            out_specs=pl.BlockSpec((Tc, B, Hp), lambda c: (c, 0, 0)),
            scratch_shapes=[pltpu.VMEM((B, Hp), jnp.float32)],
        ),
        compiler_params=pltpu.CompilerParams(
            dimension_semantics=("arbitrary",),   # sequential recurrence over time
            vmem_limit_bytes=32 << 20,
        ),
    )(gi, w_hh_p, b_hh_p, h0_pad)

    output = out_pad[:T, :, :H]
    h_final = output[T - 1][None]                  # final hidden == last output
    return output, h_final


class SequencePredRNN:
    """JAX/Pallas port of the PyTorch SequencePredRNN module."""

    def __init__(self, input_size, hidden_size, n_layers=1, seed=0):
        self.n_layers = n_layers
        self.hidden_size = hidden_size
        H = hidden_size
        k = jax.random.PRNGKey(seed)
        k1, k2, k3, k4 = jax.random.split(k, 4)
        bound = 1.0 / jnp.sqrt(H)
        # PyTorch GRU parameter shapes: weight_ih_l0 (3H, H), weight_hh_l0 (3H, H),
        # bias_ih_l0 (3H,), bias_hh_l0 (3H,), gate order [r | z | n].
        self.w_ih = jax.random.uniform(k1, (3 * H, H), jnp.float32, -bound, bound)
        self.w_hh = jax.random.uniform(k2, (3 * H, H), jnp.float32, -bound, bound)
        self.b_ih = jax.random.uniform(k3, (3 * H,), jnp.float32, -bound, bound)
        self.b_hh = jax.random.uniform(k4, (3 * H,), jnp.float32, -bound, bound)

    def forward(self, inputs, hidden):
        output = inputs
        for _ in range(self.n_layers):
            output, hidden = gru_layer(output, hidden,
                                       self.w_ih, self.w_hh, self.b_ih, self.b_hh)
        return output, hidden


def _gru_reference(inputs, hidden, w_ih, w_hh, b_ih, b_hh, n_layers):
    """Pure-JAX f32 reference of the same forward (for a correctness check)."""
    H = hidden.shape[-1]
    output = inputs
    for _ in range(n_layers):
        h = hidden[0]
        outs = []
        for t in range(output.shape[0]):
            x = output[t]
            gi = x @ w_ih.T + b_ih
            gh = h @ w_hh.T + b_hh
            r = jax.nn.sigmoid(gi[:, :H] + gh[:, :H])
            z = jax.nn.sigmoid(gi[:, H:2 * H] + gh[:, H:2 * H])
            n = jnp.tanh(gi[:, 2 * H:] + r * gh[:, 2 * H:])
            h = (1.0 - z) * n + z * h
            outs.append(h)
        output = jnp.stack(outs, axis=0)
        hidden = h[None]
    return output, hidden


if __name__ == "__main__":
    T, B, H = 8, 2, 32
    model = SequencePredRNN(input_size=H, hidden_size=H, n_layers=1, seed=0)

    key = jax.random.PRNGKey(0)
    kx, kh = jax.random.split(key)
    inputs = jax.random.normal(kx, (T, B, H), jnp.float32)   # (seq, batch, hidden)
    hidden = jax.random.normal(kh, (1, B, H), jnp.float32)   # (num_layers, batch, hidden)

    out, h_final = model.forward(inputs, hidden)
    out = jax.block_until_ready(out)
    h_final = jax.block_until_ready(h_final)

    out_ref, h_ref = _gru_reference(inputs, hidden, model.w_ih, model.w_hh,
                                    model.b_ih, model.b_hh, model.n_layers)
    assert out.shape == (T, B, H) and h_final.shape == (1, B, H)
    # Tolerance loosened vs the pure-f32 reference because the MXU dots use bf16
    # inputs (f32 accumulate, f32 gate math); real semantic bugs are O(0.1 - 1).
    assert jnp.allclose(out, out_ref, atol=5e-2), "output mismatch vs reference"
    assert jnp.allclose(h_final, h_ref, atol=5e-2), "hidden mismatch vs reference"

    print("KERNEL_OK")
</pallas_src>

<mosaic_0001>
module attributes {stable_mosaic.version = 11 : i64} {
  func.func @_input_proj_kernel(%arg0: i32, %arg1: memref<16x128xbf16, #tpu.memory_space<vmem>>, %arg2: memref<128x384xbf16, #tpu.memory_space<vmem>>, %arg3: memref<1x384xf32, #tpu.memory_space<vmem>>, %arg4: memref<16x384xf32, #tpu.memory_space<vmem>>) attributes {dimension_semantics = [#tpu.dimension_semantics<parallel>], iteration_bounds = array<i64: 1>, scalar_prefetch = 0 : i64, scratch_operands = 0 : i64, tpu.core_type = #tpu.core_type<tc>, window_params = [{transform_indices = @transform_0, window_bounds = array<i64: 16, 128>}, {pipeline_mode = #tpu.pipeline_mode<synchronous>, transform_indices = @transform_1, window_bounds = array<i64: 128, 384>}, {pipeline_mode = #tpu.pipeline_mode<synchronous>, transform_indices = @transform_2, window_bounds = array<i64: 1, 384>}, {transform_indices = @transform_3, window_bounds = array<i64: 16, 384>}]} {
    %c0 = arith.constant 0 : index
    %c0_0 = arith.constant 0 : index
    %0 = vector.load %arg1[%c0, %c0_0] : memref<16x128xbf16, #tpu.memory_space<vmem>>, vector<16x128xbf16>
    %c0_1 = arith.constant 0 : index
    %c0_2 = arith.constant 0 : index
    %1 = vector.load %arg2[%c0_1, %c0_2] : memref<128x384xbf16, #tpu.memory_space<vmem>>, vector<128x384xbf16>
    %cst = arith.constant dense<0.000000e+00> : vector<16x384xf32>
    %2 = tpu.matmul %0, %1, %cst {dimension_numbers = #tpu.dot_dimension_numbers<[1], [0], [0], [1], [0, 0, 1, 1], [], []>} : vector<16x128xbf16>, vector<128x384xbf16>, vector<16x384xf32> -> vector<16x384xf32>
    %c0_3 = arith.constant 0 : index
    %c0_4 = arith.constant 0 : index
    %3 = vector.load %arg3[%c0_3, %c0_4] : memref<1x384xf32, #tpu.memory_space<vmem>>, vector<1x384xf32>
    %4 = vector.broadcast %3 : vector<1x384xf32> to vector<16x384xf32>
    %5 = arith.addf %2, %4 : vector<16x384xf32>
    %c0_5 = arith.constant 0 : index
    %c0_6 = arith.constant 0 : index
    %6 = vector.load %arg4[%c0_5, %c0_6] : memref<16x384xf32, #tpu.memory_space<vmem>>, vector<16x384xf32>
    tpu.vector_store %arg4[%c0_5, %c0_6], %5 {strides = array<i32>} : memref<16x384xf32, #tpu.memory_space<vmem>>, vector<16x384xf32>,
    return
  }
  func.func @transform_0(%arg0: i32) -> (i32, i32) {
    %c0_i32 = arith.constant 0 : i32
    %c0_i32_0 = arith.constant 0 : i32
    return %arg0, %c0_i32 : i32, i32
  }
  func.func @transform_1(%arg0: i32) -> (i32, i32) {
    %c0_i32 = arith.constant 0 : i32
    %c0_i32_0 = arith.constant 0 : i32
    %c0_i32_1 = arith.constant 0 : i32
    return %c0_i32, %c0_i32_0 : i32, i32
  }
  func.func @transform_2(%arg0: i32) -> (i32, i32) {
    %c0_i32 = arith.constant 0 : i32
    %c0_i32_0 = arith.constant 0 : i32
    %c0_i32_1 = arith.constant 0 : i32
    return %c0_i32, %c0_i32_0 : i32, i32
  }
  func.func @transform_3(%arg0: i32) -> (i32, i32) {
    %c0_i32 = arith.constant 0 : i32
    %c0_i32_0 = arith.constant 0 : i32
    return %arg0, %c0_i32 : i32, i32
  }
}

</mosaic_0001>

<llo_original>
// kernel: tpu_custom_call.1
$region0: #{tpu_custom_call.1}
  #allocation0 [shape = 'u32[]', space=smem, size = 0x4, offset = 0x4, fixed_abs, tag = 'smem constant byte address 0x4 - core index']
  #allocation1 [shape = 'u32[72,128]{1,0:T(1,128)}', space=vmem, size = 0x9000, scoped, tag = 'internal scratch']
  %s0 = inlined_call_operand.hbm [shape: bf16[16,128], index: 0, kind: input, shape index: {}]
  %s1 = inlined_call_operand.hbm [shape: bf16[128,384], index: 1, kind: input, shape index: {}]
  %s2 = inlined_call_operand.hbm [shape: f32[1,384], index: 2, kind: input, shape index: {}]
  %s3 = inlined_call_operand.hbm [shape: f32[16,384], index: 3, kind: output, shape index: {}]
  %s4 = sld [smem:[#allocation0]]
  $region34: #{tpu_custom_call.1} parent=0
    _
  %s6 = ssub.s32 1, %s4
  %s7 = scalar_select 0, %s6, %s4
  $region1: #{tpu_custom_call.1} parent=0
    #allocation2 [shape = 'u8[4096]{0}', space=vmem, size = 0x1000, scoped, tag = 'input window, operand 0, single buffered']
    #allocation3 [shape = 's32[1]{0}', space=sflag, size = 0x4, scoped, tag = 'scoped memory for tpu_custom_call.1']
    #allocation4 [shape = 's32[1]{0}', space=sflag, size = 0x4, scoped, tag = 'scoped memory for tpu_custom_call.1']
    #allocation5 [shape = 'u8[98304]{0}', space=vmem, size = 0x18000, scoped, tag = 'input window, operand 1, single buffered']
    #allocation6 [shape = 's32[1]{0}', space=sflag, size = 0x4, scoped, tag = 'scoped memory for tpu_custom_call.1']
    #allocation7 [shape = 'u8[1536]{0}', space=vmem, size = 0x800, scoped, tag = 'input window, operand 2, single buffered']
    #allocation8 [shape = 'u8[24576]{0}', space=vmem, size = 0x6000, scoped, tag = 'output window, operand 0, single buffered']
    %8 = vsyncpa [#allocation3], 0
    %9 = vsyncpa [#allocation6], 0
    %10 = vsyncpa [#allocation4], 0
    // Predicated region
    $region2: #{tpu_custom_call.1} parent=1 // pred_check
      _
    $region3: #{tpu_custom_call.1} parent=1 // pred_check_branch
      %12 = sbr.rel (0) target = $region5
    $region4: #{tpu_custom_call.1} parent=1 // pred_region
      %14 = vsyncadd [#allocation3], 0
      %s15 = sshll.u32 %s0, 4
      %s16 = int_to_ptr.hbm [resolvable:$true] %s15
      %s17 = sshll.u32 [#allocation2], 4
      %s18 = int_to_ptr.vmem [resolvable:$true] %s17
      %23 = dma.hbm_to_vmem [thread:$0]  %s16, 128, %s18, [#allocation3], 64, 64, 4
    $region5: #{tpu_custom_call.1} parent=1 // pred_fallthru
      _
    // Predicated region
    $region6: #{tpu_custom_call.1} parent=1 // pred_check
      _
    $region7: #{tpu_custom_call.1} parent=1 // pred_check_branch
      %25 = sbr.rel (0) target = $region9
    $region8: #{tpu_custom_call.1} parent=1 // pred_region
      %27 = vsyncadd [#allocation6], 0
      %s28 = sshll.u32 %s1, 4
      %s29 = int_to_ptr.hbm [resolvable:$true] %s28
      %s30 = sshll.u32 [#allocation5], 4
      %s31 = int_to_ptr.vmem [resolvable:$true] %s30
      %36 = dma.hbm_to_vmem [thread:$0]  %s29, 3072, %s31, [#allocation6], 192, 192, 12
    $region9: #{tpu_custom_call.1} parent=1 // pred_fallthru
      _
    // Predicated region
    $region10: #{tpu_custom_call.1} parent=1 // pred_check
      _
    $region11: #{tpu_custom_call.1} parent=1 // pred_check_branch
      %38 = sbr.rel (0) target = $region13
    $region12: #{tpu_custom_call.1} parent=1 // pred_region
      %40 = vsyncadd [#allocation6], 0
      %s42 = sshll.u32 %s2, 4
      %s43 = int_to_ptr.hbm [resolvable:$true] %s42
      %s44 = sshll.u32 [#allocation7], 4
      %s45 = int_to_ptr.vmem [resolvable:$true] %s44
      %47 = dma.hbm_to_vmem [thread:$0]  %s43, 48, %s45, [#allocation6]
    $region13: #{tpu_custom_call.1} parent=1 // pred_fallthru
      _
    // Predicated region
    $region14: #{tpu_custom_call.1} parent=1 // pred_check
      _
    $region15: #{tpu_custom_call.1} parent=1 // pred_check_branch
      %49 = sbr.rel (0) target = $region17
    $region16: #{tpu_custom_call.1} parent=1 // pred_region
      %51 = dma.done [#allocation3], 128
    $region17: #{tpu_custom_call.1} parent=1 // pred_fallthru
      _
    // Predicated region
    $region18: #{tpu_custom_call.1} parent=1 // pred_check
      _
    $region19: #{tpu_custom_call.1} parent=1 // pred_check_branch
      %53 = sbr.rel (0) target = $region21
    $region20: #{tpu_custom_call.1} parent=1 // pred_region
      %55 = dma.done [#allocation6], 3072
    $region21: #{tpu_custom_call.1} parent=1 // pred_fallthru
      _
    // Predicated region
    $region22: #{tpu_custom_call.1} parent=1 // pred_check
      _
    $region23: #{tpu_custom_call.1} parent=1 // pred_check_branch
      %57 = sbr.rel (0) target = $region25
    $region24: #{tpu_custom_call.1} parent=1 // pred_region
      %59 = dma.done [#allocation6], 48
    $region25: #{tpu_custom_call.1} parent=1 // pred_fallthru
      _
    %v60 = vld [vmem:[#allocation2] sm:$0xf]
    %v61 = vld [vmem:[#allocation2 + $0x4] sm:$0xf]
    %v62 = vld [vmem:[#allocation5] sm:$0xff]
    %v63 = vld [vmem:[#allocation5 + $0x8] sm:$0xf]
    %v64 = vld [vmem:[#allocation5 + $0xc] sm:$0xff]
    %v65 = vld [vmem:[#allocation5 + $0x14] sm:$0xf]
    %v66 = vld [vmem:[#allocation5 + $0x18] sm:$0xff]
    %v67 = vld [vmem:[#allocation5 + $0x20] sm:$0xf]
    %v68 = vld [vmem:[#allocation5 + $0x24] sm:$0xff]
    %v69 = vld [vmem:[#allocation5 + $0x2c] sm:$0xf]
    %v70 = vld [vmem:[#allocation5 + $0x30] sm:$0xff]
    %v71 = vld [vmem:[#allocation5 + $0x38] sm:$0xf]
    %v72 = vld [vmem:[#allocation5 + $0x3c] sm:$0xff]
    %v73 = vld [vmem:[#allocation5 + $0x44] sm:$0xf]
    %v74 = vld [vmem:[#allocation5 + $0x48] sm:$0xff]
    %v75 = vld [vmem:[#allocation5 + $0x50] sm:$0xf]
    %v76 = vld [vmem:[#allocation5 + $0x54] sm:$0xff]
    %v77 = vld [vmem:[#allocation5 + $0x5c] sm:$0xf]
    %v78 = vld [vmem:[#allocation5 + $0x60] sm:$0xff]
    %v79 = vld [vmem:[#allocation5 + $0x68] sm:$0xf]
    %v80 = vld [vmem:[#allocation5 + $0x6c] sm:$0xff]
    %v81 = vld [vmem:[#allocation5 + $0x74] sm:$0xf]
    %v82 = vld [vmem:[#allocation5 + $0x78] sm:$0xff]
    %v83 = vld [vmem:[#allocation5 + $0x80] sm:$0xf]
    %v84 = vld [vmem:[#allocation5 + $0x84] sm:$0xff]
    %v85 = vld [vmem:[#allocation5 + $0x8c] sm:$0xf]
    %v86 = vld [vmem:[#allocation5 + $0x90] sm:$0xff]
    %v87 = vld [vmem:[#allocation5 + $0x98] sm:$0xf]
    %v88 = vld [vmem:[#allocation5 + $0x9c] sm:$0xff]
    %v89 = vld [vmem:[#allocation5 + $0xa4] sm:$0xf]
    %v90 = vld [vmem:[#allocation5 + $0xa8] sm:$0xff]
    %v91 = vld [vmem:[#allocation5 + $0xb0] sm:$0xf]
    %v92 = vld [vmem:[#allocation5 + $0xb4] sm:$0xff]
    %v93 = vld [vmem:[#allocation5 + $0xbc] sm:$0xf]
    %v94 = vld [vmem:[#allocation7] sm:$0x7]
    %v96 = vperm.slane %v94, 0
    %v97 = vperm.slane %v94, 1
    %v98 = vperm.slane %v94, 2
    %v104 = vunpack.c.l.b16 %v60
    %v105 = vunpack.c.l.b16 %v61
    %v106 = vpack.c.b16 %v105, %v104
    %v140 = vunpack.c.l.b16 %v62
    %v141 = vunpack.c.h.b16 %v62
    %v142 = vunpack.c.l.b16 %v63
    %v143 = vunpack.c.l.b16 %v64
    %v144 = vunpack.c.h.b16 %v64
    %v145 = vunpack.c.l.b16 %v65
    %v146 = vunpack.c.l.b16 %v66
    %v147 = vunpack.c.h.b16 %v66
    %v148 = vunpack.c.l.b16 %v67
    %v149 = vunpack.c.l.b16 %v68
    %v150 = vunpack.c.h.b16 %v68
    %v151 = vunpack.c.l.b16 %v69
    %v152 = vunpack.c.l.b16 %v70
    %v153 = vunpack.c.h.b16 %v70
    %v154 = vunpack.c.l.b16 %v71
    %v155 = vunpack.c.l.b16 %v72
    %v156 = vunpack.c.h.b16 %v72
    %v157 = vunpack.c.l.b16 %v73
    %v158 = vunpack.c.l.b16 %v74
    %v159 = vunpack.c.h.b16 %v74
    %v160 = vunpack.c.l.b16 %v75
    %v161 = vunpack.c.l.b16 %v76
    %v162 = vunpack.c.h.b16 %v76
    %v163 = vunpack.c.l.b16 %v77
    %v164 = vunpack.c.l.b16 %v78
    %v165 = vunpack.c.h.b16 %v78
    %v166 = vunpack.c.l.b16 %v79
    %v167 = vunpack.c.l.b16 %v80
    %v168 = vunpack.c.h.b16 %v80
    %v169 = vunpack.c.l.b16 %v81
    %v170 = vunpack.c.l.b16 %v82
    %v171 = vunpack.c.h.b16 %v82
    %v172 = vunpack.c.l.b16 %v83
    %v173 = vunpack.c.l.b16 %v84
    %v174 = vunpack.c.h.b16 %v84
    %v175 = vunpack.c.l.b16 %v85
    %v176 = vunpack.c.l.b16 %v86
    %v177 = vunpack.c.h.b16 %v86
    %v178 = vunpack.c.l.b16 %v87
    %v179 = vunpack.c.l.b16 %v88
    %v180 = vunpack.c.h.b16 %v88
    %v181 = vunpack.c.l.b16 %v89
    %v182 = vunpack.c.l.b16 %v90
    %v183 = vunpack.c.h.b16 %v90
    %v184 = vunpack.c.l.b16 %v91
    %v185 = vunpack.c.l.b16 %v92
    %v186 = vunpack.c.h.b16 %v92
    %v187 = vunpack.c.l.b16 %v93
    %v188 = vpack.c.b16 %v143, %v140
    %v189 = vpack.c.b16 %v144, %v141
    %v190 = vpack.c.b16 %v145, %v142
    %v191 = vpack.c.b16 %v149, %v146
    %v192 = vpack.c.b16 %v150, %v147
    %v193 = vpack.c.b16 %v151, %v148
    %v194 = vpack.c.b16 %v155, %v152
    %v195 = vpack.c.b16 %v156, %v153
    %v196 = vpack.c.b16 %v157, %v154
    %v197 = vpack.c.b16 %v161, %v158
    %v198 = vpack.c.b16 %v162, %v159
    %v199 = vpack.c.b16 %v163, %v160
    %v200 = vpack.c.b16 %v167, %v164
    %v201 = vpack.c.b16 %v168, %v165
    %v202 = vpack.c.b16 %v169, %v166
    %v203 = vpack.c.b16 %v173, %v170
    %v204 = vpack.c.b16 %v174, %v171
    %v205 = vpack.c.b16 %v175, %v172
    %v206 = vpack.c.b16 %v179, %v176
    %v207 = vpack.c.b16 %v180, %v177
    %v208 = vpack.c.b16 %v181, %v178
    %v209 = vpack.c.b16 %v185, %v182
    %v210 = vpack.c.b16 %v186, %v183
    %v211 = vpack.c.b16 %v187, %v184
    %236 = vmatpush.bf16.msra.mxu0 %v209
    %237 = vmatpush.bf16.msra.mxu0 %v206
    %238 = vmatpush.bf16.msra.mxu0 %v203
    %239 = vmatpush.bf16.msra.mxu0 %v200
    %240 = vmatpush.bf16.msra.mxu0 %v197
    %241 = vmatpush.bf16.msra.mxu0 %v194
    %242 = vmatpush.bf16.msra.mxu0 %v191
    %243 = vmatpush.bf16.msra.mxu0 %v188
    %244 = vmatmul.bf16.gmra.mxu0 %v106
    %v245 = vpop.f32.mrf.mxu0
    %v246 = vadd.f32 %v96, %v245
    %v247 = vpop.f32.mrf.mxu0
    %v248 = vadd.f32 %v96, %v247
    %249 = vdwg.mxu0
    %250 = vmatpush.bf16.msra.mxu0 %v210
    %251 = vmatpush.bf16.msra.mxu0 %v207
    %252 = vmatpush.bf16.msra.mxu0 %v204
    %253 = vmatpush.bf16.msra.mxu0 %v201
    %254 = vmatpush.bf16.msra.mxu0 %v198
    %255 = vmatpush.bf16.msra.mxu0 %v195
    %256 = vmatpush.bf16.msra.mxu0 %v192
    %257 = vmatpush.bf16.msra.mxu0 %v189
    %258 = vmatmul.bf16.gmra.mxu0 %v106
    %v259 = vpop.f32.mrf.mxu0
    %v260 = vadd.f32 %v97, %v259
    %v261 = vpop.f32.mrf.mxu0
    %v262 = vadd.f32 %v97, %v261
    %263 = vdwg.mxu0
    %264 = vmatpush.bf16.msra.mxu0 %v211
    %265 = vmatpush.bf16.msra.mxu0 %v208
    %266 = vmatpush.bf16.msra.mxu0 %v205
    %267 = vmatpush.bf16.msra.mxu0 %v202
    %268 = vmatpush.bf16.msra.mxu0 %v199
    %269 = vmatpush.bf16.msra.mxu0 %v196
    %270 = vmatpush.bf16.msra.mxu0 %v193
    %271 = vmatpush.bf16.msra.mxu0 %v190
    %272 = vmatmul.bf16.gmra.mxu0 %v106
    %v273 = vpop.f32.mrf.mxu0
    %v274 = vadd.f32 %v98, %v273
    %v275 = vpop.f32.mrf.mxu0
    %v276 = vadd.f32 %v98, %v275
    %277 = vdwg.mxu0
    %278 = vst [vmem:[#allocation8] sm:$0xff] %v246
    %279 = vst [vmem:[#allocation8 + $0x8] sm:$0xff] %v260
    %280 = vst [vmem:[#allocation8 + $0x10] sm:$0xff] %v274
    %281 = vst [vmem:[#allocation8 + $0x18] sm:$0xff] %v248
    %282 = vst [vmem:[#allocation8 + $0x20] sm:$0xff] %v262
    %283 = vst [vmem:[#allocation8 + $0x28] sm:$0xff] %v276
    // Predicated region
    $region26: #{tpu_custom_call.1} parent=1 // pred_check
      _
    $region27: #{tpu_custom_call.1} parent=1 // pred_check_branch
      %285 = sbr.rel (0) target = $region29
    $region28: #{tpu_custom_call.1} parent=1 // pred_region
      %287 = vsyncadd [#allocation4], 0
      %s288 = sshll.u32 [#allocation8], 4
      %s289 = int_to_ptr.vmem [resolvable:$true] %s288
      %s290 = sshll.u32 %s3, 4
      %s291 = int_to_ptr.hbm [resolvable:$true] %s290
      %296 = dma.vmem_to_hbm [thread:$0]  %s289, 768, %s291, [#allocation4], 384, 384, 24
    $region29: #{tpu_custom_call.1} parent=1 // pred_fallthru
      _
    // Predicated region
    $region30: #{tpu_custom_call.1} parent=1 // pred_check
      _
    $region31: #{tpu_custom_call.1} parent=1 // pred_check_branch
      %298 = sbr.rel (0) target = $region33
    $region32: #{tpu_custom_call.1} parent=1 // pred_region
      %300 = dma.done [#allocation4], 768
    $region33: #{tpu_custom_call.1} parent=1 // pred_fallthru
      _
    %301 = vsyncpa [#allocation3], 1
    %302 = vsyncpa [#allocation6], 1
    %303 = vsyncpa [#allocation4], 1

</llo_original>
